<compile_context>
chip_gen: v7x
topology: tpu7x:2x2x1
jax: 0.10.0
libtpu: 0.0.40
codegen_flags: <defaults>
</compile_context>

<pallas_src>
import functools

import jax
import jax.numpy as jnp
import numpy as np
from jax.experimental import pallas as pl
from jax.experimental.pallas import tpu as pltpu

BN_EPS = 1e-5  # PyTorch BatchNorm2d default


def _fused_kernel(patches_ref, w27_ref, gb_ref, wd_ref, out_ref,
                  sum_sc, ssq_sc, scale_sc, shift_sc, *, inv_n):
    p = pl.program_id(0)          # 0 = BN-stats pass, 1 = normalize/pool/deconv pass
    t = pl.program_id(1)          # spatial (pooled-pixel lane) tile

    # ---- Conv2d(3,32,k=3,p=1): per 2x2-parity plane, one K=32 (27 real taps,
    # zero-padded) MXU matmul with pooled-pixel index on lanes.  Operands are
    # cast to f32 (bf16 is storage-only) so the dot lowers on MXU & interpret.
    w27 = w27_ref[...]
    conv = [jnp.dot(w27, patches_ref[q].astype(jnp.float32),
                    preferred_element_type=jnp.float32)
            for q in range(4)]                                   # 4 x (32, TN) f32

    @pl.when(p == 0)
    def _stats_pass():
        s = conv[0].sum(axis=1, keepdims=True)
        ss = (conv[0] * conv[0]).sum(axis=1, keepdims=True)
        for q in range(1, 4):
            s = s + conv[q].sum(axis=1, keepdims=True)
            ss = ss + (conv[q] * conv[q]).sum(axis=1, keepdims=True)

        @pl.when(t == 0)
        def _init():
            sum_sc[...] = s
            ssq_sc[...] = ss

        @pl.when(t > 0)
        def _acc():
            sum_sc[...] += s
            ssq_sc[...] += ss

    @pl.when(p == 1)
    def _main_pass():
        @pl.when(t == 0)
        def _finalize_stats():
            mean = sum_sc[...] * inv_n
            var = ssq_sc[...] * inv_n - mean * mean        # biased batch variance
            scale = gb_ref[:, 0:1] * jax.lax.rsqrt(var + BN_EPS)
            scale_sc[...] = scale
            shift_sc[...] = gb_ref[:, 1:2] - mean * scale

        scale = scale_sc[...]
        shift = shift_sc[...]
        # BN affine in f32; ReLU + 2x2 max-pool in bf16 (packed VALU on v6e/v7x).
        y = [jnp.maximum((conv[q] * scale + shift).astype(jnp.bfloat16), 0.0)
             for q in range(4)]
        pooled = jnp.maximum(jnp.maximum(y[0], y[1]), jnp.maximum(y[2], y[3]))
        # ConvTranspose2d(32,1,k=2,s=2): per-pixel 32->4 matmul, weight padded
        # to 8 rows for a sublane-dense store.
        out_ref[...] = jnp.dot(wd_ref[...], pooled.astype(jnp.float32),
                               preferred_element_type=jnp.float32)


def _choose_tile(n4, max_lanes=4096):
    """Largest lane-tile: whole thing if small, else a 128-multiple divisor."""
    if n4 <= max_lanes:
        return n4
    cap = max_lanes - max_lanes % 128
    for tn in range(cap, 0, -128):
        if n4 % tn == 0:
            return tn
    return n4


def main_model_forward(x_chw, params):
    wc = params["conv_w"]                      # (32,3,3,3); conv bias cancelled by BN
    gamma, beta = params["bn_gamma"], params["bn_beta"]
    wd, bd = params["deconv_w"], params["deconv_b"]

    Cin, H, W = x_chw.shape
    assert Cin == 3 and H % 2 == 0 and W % 2 == 0
    Cout = wc.shape[0]                         # 32
    H2, W2 = H // 2, W // 2
    N4 = H2 * W2
    K, KP = Cin * 9, 32                        # 27 taps padded to a full sublane group

    # --- prologue: bf16 zero-pad + parity-blocked im2col via stride-2 slices
    # (no 5-D transpose; all glue intermediates are half-size bf16).
    xp = jnp.pad(x_chw.astype(jnp.bfloat16), ((0, 0), (1, 1), (1, 1)))  # (3,H+2,W+2)
    planes = []
    for di in (0, 1):
        for dj in (0, 1):
            taps = [xp[:, di + ki:di + ki + H:2, dj + kj:dj + kj + W:2]  # (3,H2,W2)
                    for ki in range(3) for kj in range(3)]
            planes.append(jnp.stack(taps, axis=1).reshape(K, N4))        # (27,N4)
    patches = jnp.pad(jnp.stack(planes, axis=0),
                      ((0, 0), (0, KP - K), (0, 0)))                     # (4,32,N4) bf16

    # conv weight (32,3,3,3) -> (32,27) -> K padded to 32; tiny, keep f32.
    w27 = jnp.pad(wc.reshape(Cout, K), ((0, 0), (0, KP - K))).astype(jnp.float32)
    # BN params packed: [:,0]=gamma, [:,1]=beta.
    gb = jnp.stack([gamma, beta], axis=1).astype(jnp.float32)
    # deconv weight (32,1,2,2) -> (4,32), padded to (8,32) for dense stores.
    wd8 = jnp.pad(wd[:, 0].reshape(Cout, 4).T, ((0, 4), (0, 0))).astype(jnp.float32)

    TN = _choose_tile(N4)
    T = N4 // TN
    kernel = functools.partial(_fused_kernel, inv_n=1.0 / float(H * W))

    out8 = pl.pallas_call(
        kernel,
        out_shape=jax.ShapeDtypeStruct((8, N4), jnp.float32),
        grid=(2, T),
        in_specs=[
            pl.BlockSpec((4, KP, TN), lambda p, t: (0, 0, t)),   # patches (tiled)
            pl.BlockSpec((Cout, KP), lambda p, t: (0, 0)),       # conv weight (resident)
            pl.BlockSpec((Cout, 2), lambda p, t: (0, 0)),        # gamma/beta (resident)
            pl.BlockSpec((8, Cout), lambda p, t: (0, 0)),        # deconv weight (resident)
        ],
        # Same block for every stats-pass step (nothing is written there);
        # tile t is only produced / written back during pass 1.
        out_specs=pl.BlockSpec((8, TN), lambda p, t: (0, p * t)),
        scratch_shapes=[pltpu.VMEM((Cout, 1), jnp.float32)] * 4,  # sum, sumsq, scale, shift
        compiler_params=pltpu.CompilerParams(
            dimension_semantics=("arbitrary", "arbitrary"),
            vmem_limit_bytes=48 * 1024 * 1024),
    )(patches, w27, gb, wd8)

    # --- epilogue: drop the 4 zero-padded deconv rows, scatter the 2x2 parity
    # planes back to (H, W), add the deconv bias (torch .squeeze() -> (H, W)).
    d = out8[:4]
    out = d.reshape(2, 2, H2, W2).transpose(2, 0, 3, 1).reshape(H, W) + bd[0]
    return out


def reference_forward(x_chw, params):
    """Pure-JAX f32 reference mirroring the PyTorch forward (training-mode BN)."""
    wc, bc = params["conv_w"], params["conv_b"]
    gamma, beta = params["bn_gamma"], params["bn_beta"]
    wd, bd = params["deconv_w"], params["deconv_b"]
    xb = x_chw[None]                                                   # (1,3,H,W)
    conv = jax.lax.conv_general_dilated(
        xb, wc, window_strides=(1, 1), padding=((1, 1), (1, 1)),
        dimension_numbers=("NCHW", "OIHW", "NCHW")) + bc[None, :, None, None]
    mean = conv.mean(axis=(0, 2, 3), keepdims=True)
    var = ((conv - mean) ** 2).mean(axis=(0, 2, 3), keepdims=True)
    y = (conv - mean) / jnp.sqrt(var + BN_EPS) * gamma[None, :, None, None] \
        + beta[None, :, None, None]
    y = jnp.maximum(y, 0.0)
    p = jax.lax.reduce_window(y, -jnp.inf, jax.lax.max,
                              (1, 1, 2, 2), (1, 1, 2, 2), "VALID")     # (1,32,H/2,W/2)
    H2, W2 = p.shape[2], p.shape[3]
    o = jnp.einsum("chw,ckl->hkwl", p[0], wd[:, 0]).reshape(2 * H2, 2 * W2) + bd[0]
    return o


if __name__ == "__main__":
    key = jax.random.PRNGKey(0)
    kx, kw1, kb1, kg, kbe, kw2, kb2 = jax.random.split(key, 7)
    H = W = 16
    x = jax.random.normal(kx, (3, H, W), jnp.float32)
    params = {
        "conv_w": jax.random.normal(kw1, (32, 3, 3, 3), jnp.float32) * 0.2,
        "conv_b": jax.random.normal(kb1, (32,), jnp.float32) * 0.1,   # reference only
        "bn_gamma": 1.0 + 0.2 * jax.random.normal(kg, (32,), jnp.float32),
        "bn_beta": 0.1 * jax.random.normal(kbe, (32,), jnp.float32),
        "deconv_w": jax.random.normal(kw2, (32, 1, 2, 2), jnp.float32) * 0.2,
        "deconv_b": jax.random.normal(kb2, (1,), jnp.float32) * 0.1,
    }

    out = jax.block_until_ready(jax.jit(main_model_forward)(x, params))
    assert out.shape == (H, W), out.shape

    ref = reference_forward(x, params)
    # tolerance accounts for bf16 input patches / bf16 relu+pool (f32 BN + MXU acc)
    np.testing.assert_allclose(np.asarray(out), np.asarray(ref),
                               rtol=2e-2, atol=2e-2)
    print("KERNEL_OK")
</pallas_src>

<mosaic_0001>
module attributes {stable_mosaic.version = 11 : i64} {
  func.func @_fused_kernel(%arg0: i32, %arg1: i32, %arg2: memref<4x32x64xbf16, #tpu.memory_space<vmem>>, %arg3: memref<32x32xf32, #tpu.memory_space<vmem>>, %arg4: memref<32x2xf32, #tpu.memory_space<vmem>>, %arg5: memref<8x32xf32, #tpu.memory_space<vmem>>, %arg6: memref<8x64xf32, #tpu.memory_space<vmem>>, %arg7: memref<32x1xf32, #tpu.memory_space<vmem>>, %arg8: memref<32x1xf32, #tpu.memory_space<vmem>>, %arg9: memref<32x1xf32, #tpu.memory_space<vmem>>, %arg10: memref<32x1xf32, #tpu.memory_space<vmem>>) attributes {dimension_semantics = [#tpu.dimension_semantics<arbitrary>, #tpu.dimension_semantics<arbitrary>], iteration_bounds = array<i64: 2, 1>, scalar_prefetch = 0 : i64, scratch_operands = 4 : i64, tpu.core_type = #tpu.core_type<tc>, window_params = [{transform_indices = @transform_0, window_bounds = array<i64: 4, 32, 64>}, {pipeline_mode = #tpu.pipeline_mode<synchronous>, transform_indices = @transform_1, window_bounds = array<i64: 32, 32>}, {pipeline_mode = #tpu.pipeline_mode<synchronous>, transform_indices = @transform_2, window_bounds = array<i64: 32, 2>}, {pipeline_mode = #tpu.pipeline_mode<synchronous>, transform_indices = @transform_3, window_bounds = array<i64: 8, 32>}, {transform_indices = @transform_4, window_bounds = array<i64: 8, 64>}]} {
    %c0 = arith.constant 0 : index
    %c0_0 = arith.constant 0 : index
    %0 = vector.load %arg3[%c0, %c0_0] : memref<32x32xf32, #tpu.memory_space<vmem>>, vector<32x32xf32>
    %c0_1 = arith.constant 0 : index
    %c0_2 = arith.constant 0 : index
    %c0_3 = arith.constant 0 : index
    %1 = vector.load %arg2[%c0_1, %c0_2, %c0_3] : memref<4x32x64xbf16, #tpu.memory_space<vmem>>, vector<1x32x64xbf16>
    %2 = vector.shape_cast %1 : vector<1x32x64xbf16> to vector<32x64xbf16>
    %3 = arith.extf %2 : vector<32x64xbf16> to vector<32x64xf32>
    %cst = arith.constant dense<0.000000e+00> : vector<32x64xf32>
    %4 = tpu.matmul %0, %3, %cst {dimension_numbers = #tpu.dot_dimension_numbers<[1], [0], [0], [1], [0, 0, 1, 1], [], []>} : vector<32x32xf32>, vector<32x64xf32>, vector<32x64xf32> -> vector<32x64xf32>
    %c1 = arith.constant 1 : index
    %c0_4 = arith.constant 0 : index
    %c0_5 = arith.constant 0 : index
    %5 = vector.load %arg2[%c1, %c0_4, %c0_5] : memref<4x32x64xbf16, #tpu.memory_space<vmem>>, vector<1x32x64xbf16>
    %6 = vector.shape_cast %5 : vector<1x32x64xbf16> to vector<32x64xbf16>
    %7 = arith.extf %6 : vector<32x64xbf16> to vector<32x64xf32>
    %cst_6 = arith.constant dense<0.000000e+00> : vector<32x64xf32>
    %8 = tpu.matmul %0, %7, %cst_6 {dimension_numbers = #tpu.dot_dimension_numbers<[1], [0], [0], [1], [0, 0, 1, 1], [], []>} : vector<32x32xf32>, vector<32x64xf32>, vector<32x64xf32> -> vector<32x64xf32>
    %c2 = arith.constant 2 : index
    %c0_7 = arith.constant 0 : index
    %c0_8 = arith.constant 0 : index
    %9 = vector.load %arg2[%c2, %c0_7, %c0_8] : memref<4x32x64xbf16, #tpu.memory_space<vmem>>, vector<1x32x64xbf16>
    %10 = vector.shape_cast %9 : vector<1x32x64xbf16> to vector<32x64xbf16>
    %11 = arith.extf %10 : vector<32x64xbf16> to vector<32x64xf32>
    %cst_9 = arith.constant dense<0.000000e+00> : vector<32x64xf32>
    %12 = tpu.matmul %0, %11, %cst_9 {dimension_numbers = #tpu.dot_dimension_numbers<[1], [0], [0], [1], [0, 0, 1, 1], [], []>} : vector<32x32xf32>, vector<32x64xf32>, vector<32x64xf32> -> vector<32x64xf32>
    %c3 = arith.constant 3 : index
    %c0_10 = arith.constant 0 : index
    %c0_11 = arith.constant 0 : index
    %13 = vector.load %arg2[%c3, %c0_10, %c0_11] : memref<4x32x64xbf16, #tpu.memory_space<vmem>>, vector<1x32x64xbf16>
    %14 = vector.shape_cast %13 : vector<1x32x64xbf16> to vector<32x64xbf16>
    %15 = arith.extf %14 : vector<32x64xbf16> to vector<32x64xf32>
    %cst_12 = arith.constant dense<0.000000e+00> : vector<32x64xf32>
    %16 = tpu.matmul %0, %15, %cst_12 {dimension_numbers = #tpu.dot_dimension_numbers<[1], [0], [0], [1], [0, 0, 1, 1], [], []>} : vector<32x32xf32>, vector<32x64xf32>, vector<32x64xf32> -> vector<32x64xf32>
    %c0_i32 = arith.constant 0 : i32
    %17 = arith.cmpi eq, %arg0, %c0_i32 : i32
    %18 = arith.extui %17 : i1 to i32
    %c0_i32_13 = arith.constant 0 : i32
    %19 = arith.cmpi ne, %18, %c0_i32_13 : i32
    scf.if %19 {
      %cst_15 = arith.constant dense<0.000000e+00> : vector<32xf32>
      %23 = vector.multi_reduction <add>, %4, %cst_15 [1] : vector<32x64xf32> to vector<32xf32>
      %24 = vector.shape_cast %23 : vector<32xf32> to vector<32x1xf32>
      %25 = arith.mulf %4, %4 : vector<32x64xf32>
      %cst_16 = arith.constant dense<0.000000e+00> : vector<32xf32>
      %26 = vector.multi_reduction <add>, %25, %cst_16 [1] : vector<32x64xf32> to vector<32xf32>
      %27 = vector.shape_cast %26 : vector<32xf32> to vector<32x1xf32>
      %cst_17 = arith.constant dense<0.000000e+00> : vector<32xf32>
      %28 = vector.multi_reduction <add>, %8, %cst_17 [1] : vector<32x64xf32> to vector<32xf32>
      %29 = vector.shape_cast %28 : vector<32xf32> to vector<32x1xf32>
      %30 = arith.addf %24, %29 : vector<32x1xf32>
      %31 = arith.mulf %8, %8 : vector<32x64xf32>
      %cst_18 = arith.constant dense<0.000000e+00> : vector<32xf32>
      %32 = vector.multi_reduction <add>, %31, %cst_18 [1] : vector<32x64xf32> to vector<32xf32>
      %33 = vector.shape_cast %32 : vector<32xf32> to vector<32x1xf32>
      %34 = arith.addf %27, %33 : vector<32x1xf32>
      %cst_19 = arith.constant dense<0.000000e+00> : vector<32xf32>
      %35 = vector.multi_reduction <add>, %12, %cst_19 [1] : vector<32x64xf32> to vector<32xf32>
      %36 = vector.shape_cast %35 : vector<32xf32> to vector<32x1xf32>
      %37 = arith.addf %30, %36 : vector<32x1xf32>
      %38 = arith.mulf %12, %12 : vector<32x64xf32>
      %cst_20 = arith.constant dense<0.000000e+00> : vector<32xf32>
      %39 = vector.multi_reduction <add>, %38, %cst_20 [1] : vector<32x64xf32> to vector<32xf32>
      %40 = vector.shape_cast %39 : vector<32xf32> to vector<32x1xf32>
      %41 = arith.addf %34, %40 : vector<32x1xf32>
      %cst_21 = arith.constant dense<0.000000e+00> : vector<32xf32>
      %42 = vector.multi_reduction <add>, %16, %cst_21 [1] : vector<32x64xf32> to vector<32xf32>
      %43 = vector.shape_cast %42 : vector<32xf32> to vector<32x1xf32>
      %44 = arith.addf %37, %43 : vector<32x1xf32>
      %45 = arith.mulf %16, %16 : vector<32x64xf32>
      %cst_22 = arith.constant dense<0.000000e+00> : vector<32xf32>
      %46 = vector.multi_reduction <add>, %45, %cst_22 [1] : vector<32x64xf32> to vector<32xf32>
      %47 = vector.shape_cast %46 : vector<32xf32> to vector<32x1xf32>
      %48 = arith.addf %41, %47 : vector<32x1xf32>
      %c0_i32_23 = arith.constant 0 : i32
      %49 = arith.cmpi eq, %arg1, %c0_i32_23 : i32
      %50 = arith.extui %49 : i1 to i32
      %c0_i32_24 = arith.constant 0 : i32
      %51 = arith.cmpi ne, %50, %c0_i32_24 : i32
      scf.if %51 {
        %c0_27 = arith.constant 0 : index
        %c0_28 = arith.constant 0 : index
        %55 = vector.load %arg7[%c0_27, %c0_28] : memref<32x1xf32, #tpu.memory_space<vmem>>, vector<32x1xf32>
        tpu.vector_store %arg7[%c0_27, %c0_28], %44 {strides = array<i32>} : memref<32x1xf32, #tpu.memory_space<vmem>>, vector<32x1xf32>,
        %c0_29 = arith.constant 0 : index
        %c0_30 = arith.constant 0 : index
        %56 = vector.load %arg8[%c0_29, %c0_30] : memref<32x1xf32, #tpu.memory_space<vmem>>, vector<32x1xf32>
        tpu.vector_store %arg8[%c0_29, %c0_30], %48 {strides = array<i32>} : memref<32x1xf32, #tpu.memory_space<vmem>>, vector<32x1xf32>,
      } else {
      }
      %c0_i32_25 = arith.constant 0 : i32
      %52 = arith.cmpi sgt, %arg1, %c0_i32_25 : i32
      %53 = arith.extui %52 : i1 to i32
      %c0_i32_26 = arith.constant 0 : i32
      %54 = arith.cmpi ne, %53, %c0_i32_26 : i32
      scf.if %54 {
        %c0_27 = arith.constant 0 : index
        %c0_28 = arith.constant 0 : index
        %55 = vector.load %arg7[%c0_27, %c0_28] : memref<32x1xf32, #tpu.memory_space<vmem>>, vector<32x1xf32>
        %56 = arith.addf %55, %44 : vector<32x1xf32>
        %c0_29 = arith.constant 0 : index
        %c0_30 = arith.constant 0 : index
        %57 = vector.load %arg7[%c0_29, %c0_30] : memref<32x1xf32, #tpu.memory_space<vmem>>, vector<32x1xf32>
        tpu.vector_store %arg7[%c0_29, %c0_30], %56 {strides = array<i32>} : memref<32x1xf32, #tpu.memory_space<vmem>>, vector<32x1xf32>,
        %c0_31 = arith.constant 0 : index
        %c0_32 = arith.constant 0 : index
        %58 = vector.load %arg8[%c0_31, %c0_32] : memref<32x1xf32, #tpu.memory_space<vmem>>, vector<32x1xf32>
        %59 = arith.addf %58, %48 : vector<32x1xf32>
        %c0_33 = arith.constant 0 : index
        %c0_34 = arith.constant 0 : index
        %60 = vector.load %arg8[%c0_33, %c0_34] : memref<32x1xf32, #tpu.memory_space<vmem>>, vector<32x1xf32>
        tpu.vector_store %arg8[%c0_33, %c0_34], %59 {strides = array<i32>} : memref<32x1xf32, #tpu.memory_space<vmem>>, vector<32x1xf32>,
      } else {
      }
    } else {
    }
    %c1_i32 = arith.constant 1 : i32
    %20 = arith.cmpi eq, %arg0, %c1_i32 : i32
    %21 = arith.extui %20 : i1 to i32
    %c0_i32_14 = arith.constant 0 : i32
    %22 = arith.cmpi ne, %21, %c0_i32_14 : i32
    scf.if %22 {
      %c0_i32_15 = arith.constant 0 : i32
      %23 = arith.cmpi eq, %arg1, %c0_i32_15 : i32
      %24 = arith.extui %23 : i1 to i32
      %c0_i32_16 = arith.constant 0 : i32
      %25 = arith.cmpi ne, %24, %c0_i32_16 : i32
      scf.if %25 {
        %c0_30 = arith.constant 0 : index
        %c0_31 = arith.constant 0 : index
        %63 = vector.load %arg7[%c0_30, %c0_31] : memref<32x1xf32, #tpu.memory_space<vmem>>, vector<32x1xf32>
        %cst_32 = arith.constant 3.906250e-03 : f32
        %64 = vector.broadcast %cst_32 : f32 to vector<32x1xf32>
        %65 = arith.mulf %63, %64 : vector<32x1xf32>
        %c0_33 = arith.constant 0 : index
        %c0_34 = arith.constant 0 : index
        %66 = vector.load %arg8[%c0_33, %c0_34] : memref<32x1xf32, #tpu.memory_space<vmem>>, vector<32x1xf32>
        %cst_35 = arith.constant 3.906250e-03 : f32
        %67 = vector.broadcast %cst_35 : f32 to vector<32x1xf32>
        %68 = arith.mulf %66, %67 : vector<32x1xf32>
        %69 = arith.mulf %65, %65 : vector<32x1xf32>
        %70 = arith.subf %68, %69 : vector<32x1xf32>
        %c0_36 = arith.constant 0 : index
        %c0_37 = arith.constant 0 : index
        %71 = vector.load %arg4[%c0_36, %c0_37] : memref<32x2xf32, #tpu.memory_space<vmem>>, vector<32x1xf32>
        %cst_38 = arith.constant 9.99999974E-6 : f32
        %72 = vector.broadcast %cst_38 : f32 to vector<32x1xf32>
        %73 = arith.addf %70, %72 : vector<32x1xf32>
        %74 = math.rsqrt %73 : vector<32x1xf32>
        %75 = arith.mulf %71, %74 : vector<32x1xf32>
        %c0_39 = arith.constant 0 : index
        %c0_40 = arith.constant 0 : index
        %76 = vector.load %arg9[%c0_39, %c0_40] : memref<32x1xf32, #tpu.memory_space<vmem>>, vector<32x1xf32>
        tpu.vector_store %arg9[%c0_39, %c0_40], %75 {strides = array<i32>} : memref<32x1xf32, #tpu.memory_space<vmem>>, vector<32x1xf32>,
        %c0_41 = arith.constant 0 : index
        %c1_42 = arith.constant 1 : index
        %77 = vector.load %arg4[%c0_41, %c1_42] : memref<32x2xf32, #tpu.memory_space<vmem>>, vector<32x1xf32>
        %78 = arith.mulf %65, %75 : vector<32x1xf32>
        %79 = arith.subf %77, %78 : vector<32x1xf32>
        %c0_43 = arith.constant 0 : index
        %c0_44 = arith.constant 0 : index
        %80 = vector.load %arg10[%c0_43, %c0_44] : memref<32x1xf32, #tpu.memory_space<vmem>>, vector<32x1xf32>
        tpu.vector_store %arg10[%c0_43, %c0_44], %79 {strides = array<i32>} : memref<32x1xf32, #tpu.memory_space<vmem>>, vector<32x1xf32>,
      } else {
      }
      %c0_17 = arith.constant 0 : index
      %c0_18 = arith.constant 0 : index
      %26 = vector.load %arg9[%c0_17, %c0_18] : memref<32x1xf32, #tpu.memory_space<vmem>>, vector<32x1xf32>
      %c0_19 = arith.constant 0 : index
      %c0_20 = arith.constant 0 : index
      %27 = vector.load %arg10[%c0_19, %c0_20] : memref<32x1xf32, #tpu.memory_space<vmem>>, vector<32x1xf32>
      %28 = vector.broadcast %26 : vector<32x1xf32> to vector<32x64xf32>
      %29 = arith.mulf %4, %28 : vector<32x64xf32>
      %30 = vector.broadcast %27 : vector<32x1xf32> to vector<32x64xf32>
      %31 = arith.addf %29, %30 : vector<32x64xf32>
      %32 = arith.truncf %31 : vector<32x64xf32> to vector<32x64xbf16>
      %cst_21 = arith.constant 0.000000e+00 : bf16
      %33 = vector.broadcast %cst_21 : bf16 to vector<32x64xbf16>
      %34 = arith.maximumf %32, %33 : vector<32x64xbf16>
      %35 = vector.broadcast %26 : vector<32x1xf32> to vector<32x64xf32>
      %36 = arith.mulf %8, %35 : vector<32x64xf32>
      %37 = vector.broadcast %27 : vector<32x1xf32> to vector<32x64xf32>
      %38 = arith.addf %36, %37 : vector<32x64xf32>
      %39 = arith.truncf %38 : vector<32x64xf32> to vector<32x64xbf16>
      %cst_22 = arith.constant 0.000000e+00 : bf16
      %40 = vector.broadcast %cst_22 : bf16 to vector<32x64xbf16>
      %41 = arith.maximumf %39, %40 : vector<32x64xbf16>
      %42 = vector.broadcast %26 : vector<32x1xf32> to vector<32x64xf32>
      %43 = arith.mulf %12, %42 : vector<32x64xf32>
      %44 = vector.broadcast %27 : vector<32x1xf32> to vector<32x64xf32>
      %45 = arith.addf %43, %44 : vector<32x64xf32>
      %46 = arith.truncf %45 : vector<32x64xf32> to vector<32x64xbf16>
      %cst_23 = arith.constant 0.000000e+00 : bf16
      %47 = vector.broadcast %cst_23 : bf16 to vector<32x64xbf16>
      %48 = arith.maximumf %46, %47 : vector<32x64xbf16>
      %49 = vector.broadcast %26 : vector<32x1xf32> to vector<32x64xf32>
      %50 = arith.mulf %16, %49 : vector<32x64xf32>
      %51 = vector.broadcast %27 : vector<32x1xf32> to vector<32x64xf32>
      %52 = arith.addf %50, %51 : vector<32x64xf32>
      %53 = arith.truncf %52 : vector<32x64xf32> to vector<32x64xbf16>
      %cst_24 = arith.constant 0.000000e+00 : bf16
      %54 = vector.broadcast %cst_24 : bf16 to vector<32x64xbf16>
      %55 = arith.maximumf %53, %54 : vector<32x64xbf16>
      %56 = arith.maximumf %34, %41 : vector<32x64xbf16>
      %57 = arith.maximumf %48, %55 : vector<32x64xbf16>
      %58 = arith.maximumf %56, %57 : vector<32x64xbf16>
      %c0_25 = arith.constant 0 : index
      %c0_26 = arith.constant 0 : index
      %59 = vector.load %arg5[%c0_25, %c0_26] : memref<8x32xf32, #tpu.memory_space<vmem>>, vector<8x32xf32>
      %60 = arith.extf %58 : vector<32x64xbf16> to vector<32x64xf32>
      %cst_27 = arith.constant dense<0.000000e+00> : vector<8x64xf32>
      %61 = tpu.matmul %59, %60, %cst_27 {dimension_numbers = #tpu.dot_dimension_numbers<[1], [0], [0], [1], [0, 0, 1, 1], [], []>} : vector<8x32xf32>, vector<32x64xf32>, vector<8x64xf32> -> vector<8x64xf32>
      %c0_28 = arith.constant 0 : index
      %c0_29 = arith.constant 0 : index
      %62 = vector.load %arg6[%c0_28, %c0_29] : memref<8x64xf32, #tpu.memory_space<vmem>>, vector<8x64xf32>
      tpu.vector_store %arg6[%c0_28, %c0_29], %61 {strides = array<i32>} : memref<8x64xf32, #tpu.memory_space<vmem>>, vector<8x64xf32>,
    } else {
    }
    return
  }
  func.func @transform_0(%arg0: i32, %arg1: i32) -> (i32, i32, i32) {
    %c0_i32 = arith.constant 0 : i32
    %c0_i32_0 = arith.constant 0 : i32
    %c0_i32_1 = arith.constant 0 : i32
    return %c0_i32, %c0_i32_0, %arg1 : i32, i32, i32
  }
  func.func @transform_1(%arg0: i32, %arg1: i32) -> (i32, i32) {
    %c0_i32 = arith.constant 0 : i32
    %c0_i32_0 = arith.constant 0 : i32
    %c0_i32_1 = arith.constant 0 : i32
    return %c0_i32, %c0_i32_0 : i32, i32
  }
  func.func @transform_2(%arg0: i32, %arg1: i32) -> (i32, i32) {
    %c0_i32 = arith.constant 0 : i32
    %c0_i32_0 = arith.constant 0 : i32
    %c0_i32_1 = arith.constant 0 : i32
    return %c0_i32, %c0_i32_0 : i32, i32
  }
  func.func @transform_3(%arg0: i32, %arg1: i32) -> (i32, i32) {
    %c0_i32 = arith.constant 0 : i32
    %c0_i32_0 = arith.constant 0 : i32
    %c0_i32_1 = arith.constant 0 : i32
    return %c0_i32, %c0_i32_0 : i32, i32
  }
  func.func @transform_4(%arg0: i32, %arg1: i32) -> (i32, i32) {
    %0 = arith.muli %arg0, %arg1 : i32
    %c0_i32 = arith.constant 0 : i32
    %c0_i32_0 = arith.constant 0 : i32
    return %c0_i32, %0 : i32, i32
  }
}

</mosaic_0001>

<llo_original>
// kernel: main_model_forward.1
$region0: #{main_model_forward.1}
  #allocation0 [shape = 'u32[]', space=smem, size = 0x4, offset = 0x4, fixed_abs, tag = 'smem constant byte address 0x4 - core index']
  #allocation1 [shape = 'u32[144,128]{1,0:T(1,128)}', space=vmem, size = 0x12000, scoped, tag = 'internal scratch']
  #allocation2 [shape = 'f32[32,1]{1,0:T(8,128)}', space=vmem, size = 0x4000, scoped, tag = 'scratch operand']
  #allocation3 [shape = 'f32[32,1]{1,0:T(8,128)}', space=vmem, size = 0x4000, scoped, tag = 'scratch operand']
  #allocation4 [shape = 'f32[32,1]{1,0:T(8,128)}', space=vmem, size = 0x4000, scoped, tag = 'scratch operand']
  #allocation5 [shape = 'f32[32,1]{1,0:T(8,128)}', space=vmem, size = 0x4000, scoped, tag = 'scratch operand']
  %s0 = inlined_call_operand.vmem [shape: bf16[4,32,64], index: 0, kind: input, shape index: {}]
  %s1 = inlined_call_operand.vmem [shape: f32[32,32], index: 1, kind: input, shape index: {}]
  %s2 = inlined_call_operand.vmem [shape: f32[32,2], index: 2, kind: input, shape index: {}]
  %s3 = inlined_call_operand.vmem [shape: f32[8,32], index: 3, kind: input, shape index: {}]
  %s4 = inlined_call_operand.vmem [shape: f32[8,64], index: 4, kind: output, shape index: {}]
  %s5 = sld [smem:[#allocation0]]
  $region69: #{main_model_forward.1} parent=0
    _
  %s7 = ssub.s32 1, %s5
  %s8 = scalar_select 0, %s7, %s5
  loop: start=0, step=1, limit=4
  $region2: #{main_model_forward.1} parent=0 // loop_pre_header
    _
  $region3: #{main_model_forward.1} parent=0 // loop_header
    %s10 = sphi 0, %s14
    %p11 = scmp.ge.s32.totalorder %s10, 4
    %s17 = sphi 0, %s29
    %s18 = sphi 0, %s25
    %s19 = sphi 0, %s17
    %s20 = sphi 0, %s18
    %s21 = sphi 0, %s19
    %s22 = sphi 0, %s20
    %s32 = sphi 0, %s34
    %s35 = sphi 0, %s32
    %s36 = sphi 0, %s35
    %s52 = sphi 0, %s36
    %s56 = sphi 0, %s56
    %s58 = sphi 0, %s56
    %s59 = sphi 0, %s58
    %s73 = sphi 0, %s59
    %s77 = sphi 0, %s77
    %s79 = sphi 0, %s77
    %s80 = sphi 0, %s79
    %s94 = sphi 0, %s80
    %s98 = sphi 0, %s98
    %s100 = sphi 0, %s98
    %s101 = sphi 0, %s100
    %s115 = sphi 0, %s101
    %s123 = sphi 0, %s125
    %s126 = sphi 0, %s123
    %s127 = sphi 0, %s126
    %s143 = sphi 0, %s127
  $region4: #{main_model_forward.1} parent=0 // loop_header_branch
    %13 = sbr.rel (%p11) target = $region8
  $region5: #{main_model_forward.1} parent=0 // loop_body
    %s15 = ssub.s32 %s10, 1
    %s16 = ssub.s32 %s10, 2
    %s23 = sadd.s32 1, %s18
    %p24 = scmp.ge.s32.totalorder %s23, 1
    %s25 = scalar_select %p24, 0, %s23
    %s26 = sadd.s32 1, %s17
    %s27 = scalar_select %p24, %s26, %s17
    %p28 = scmp.ge.s32.totalorder %s27, 2
    %s29 = scalar_select %p28, 0, %s27
    %s30 = ssub.s32 %s18, %s25
    %p31 = scmp.eq.s32.totalorder %s30, 0
    %s33 = sadd.s32 %s32, 1
    %s34 = scalar_select %p31, %s32, %s33
    %p37 = pneg %p31
    %p38 = scmp.eq.s32.totalorder %s10, 1
    %p39 = por %p37, %p38
    %p40 = scmp.ne.s32.totalorder %s32, %s35
    %p41 = scmp.eq.s32.totalorder %s10, 0
    %p42 = por %p40, %p41
    %p43 = scmp.ne.s32.totalorder %s32, %s35
    %p44 = scmp.eq.s32.totalorder %s15, 1
    %p45 = por %p43, %p44
    %p46 = scmp.ne.s32.totalorder %s35, %s36
    %p47 = scmp.eq.s32.totalorder %s15, 0
    %p48 = por %p46, %p47
    %p49 = scmp.ne.s32.totalorder %s35, %s36
    %p50 = scmp.eq.s32.totalorder %s16, 1
    %p51 = por %p49, %p50
    %p53 = scmp.ne.s32.totalorder %s36, %s52
    %p54 = scmp.eq.s32.totalorder %s16, 0
    %p55 = por %p53, %p54
    %s57 = sadd.s32 %s56, 1
    %p60 = scmp.eq.s32.totalorder %s10, 1
    %p61 = scmp.ne.s32.totalorder %s56, %s58
    %p62 = scmp.eq.s32.totalorder %s10, 0
    %p63 = por %p61, %p62
    %p64 = scmp.ne.s32.totalorder %s56, %s58
    %p65 = scmp.eq.s32.totalorder %s15, 1
    %p66 = por %p64, %p65
    %p67 = scmp.ne.s32.totalorder %s58, %s59
    %p68 = scmp.eq.s32.totalorder %s15, 0
    %p69 = por %p67, %p68
    %p70 = scmp.ne.s32.totalorder %s58, %s59
    %p71 = scmp.eq.s32.totalorder %s16, 1
    %p72 = por %p70, %p71
    %p74 = scmp.ne.s32.totalorder %s59, %s73
    %p75 = scmp.eq.s32.totalorder %s16, 0
    %p76 = por %p74, %p75
    %s78 = sadd.s32 %s77, 1
    %p81 = scmp.eq.s32.totalorder %s10, 1
    %p82 = scmp.ne.s32.totalorder %s77, %s79
    %p83 = scmp.eq.s32.totalorder %s10, 0
    %p84 = por %p82, %p83
    %p85 = scmp.ne.s32.totalorder %s77, %s79
    %p86 = scmp.eq.s32.totalorder %s15, 1
    %p87 = por %p85, %p86
    %p88 = scmp.ne.s32.totalorder %s79, %s80
    %p89 = scmp.eq.s32.totalorder %s15, 0
    %p90 = por %p88, %p89
    %p91 = scmp.ne.s32.totalorder %s79, %s80
    %p92 = scmp.eq.s32.totalorder %s16, 1
    %p93 = por %p91, %p92
    %p95 = scmp.ne.s32.totalorder %s80, %s94
    %p96 = scmp.eq.s32.totalorder %s16, 0
    %p97 = por %p95, %p96
    %s99 = sadd.s32 %s98, 1
    %p102 = scmp.eq.s32.totalorder %s10, 1
    %p103 = scmp.ne.s32.totalorder %s98, %s100
    %p104 = scmp.eq.s32.totalorder %s10, 0
    %p105 = por %p103, %p104
    %p106 = scmp.ne.s32.totalorder %s98, %s100
    %p107 = scmp.eq.s32.totalorder %s15, 1
    %p108 = por %p106, %p107
    %p109 = scmp.ne.s32.totalorder %s100, %s101
    %p110 = scmp.eq.s32.totalorder %s15, 0
    %p111 = por %p109, %p110
    %p112 = scmp.ne.s32.totalorder %s100, %s101
    %p113 = scmp.eq.s32.totalorder %s16, 1
    %p114 = por %p112, %p113
    %p116 = scmp.ne.s32.totalorder %s101, %s115
    %p117 = scmp.eq.s32.totalorder %s16, 0
    %p118 = por %p116, %p117
    %s119 = smul.u32 %s17, %s18
    %s120 = smul.u32 %s29, %s25
    %s121 = ssub.s32 %s119, %s120
    %p122 = scmp.eq.s32.totalorder %s121, 0
    %s124 = sadd.s32 %s123, 1
    %s125 = scalar_select %p122, %s123, %s124
    %p128 = pneg %p122
    %p129 = scmp.eq.s32.totalorder %s10, 1
    %p130 = por %p128, %p129
    %p131 = scmp.ne.s32.totalorder %s123, %s126
    %p132 = scmp.eq.s32.totalorder %s10, 0
    %p133 = por %p131, %p132
    %p134 = scmp.ne.s32.totalorder %s123, %s126
    %p135 = scmp.eq.s32.totalorder %s15, 1
    %p136 = por %p134, %p135
    %p137 = scmp.ne.s32.totalorder %s126, %s127
    %p138 = scmp.eq.s32.totalorder %s15, 0
    %p139 = por %p137, %p138
    %p140 = scmp.ne.s32.totalorder %s126, %s127
    %p141 = scmp.eq.s32.totalorder %s16, 1
    %p142 = por %p140, %p141
    %p144 = scmp.ne.s32.totalorder %s127, %s143
    %p145 = scmp.eq.s32.totalorder %s16, 0
    %p146 = por %p144, %p145
    %p147 = scmp.le.s32.totalorder 1, %s10
    %p148 = scmp.lt.s32.totalorder %s10, 3
    %p149 = pnand %p147, %p148
    %p150 = pneg %p149
    // Predicated region
    $region9: #{main_model_forward.1} parent=5 // pred_check
      _
    $region10: #{main_model_forward.1} parent=5 // pred_check_branch
      %152 = sbr.rel (%p149) target = $region12
    $region11: #{main_model_forward.1} parent=5 // pred_region
      %s153 = ssub.s32 %s10, 1
      // Predicated region
      $region13: #{main_model_forward.1} parent=11 // pred_check
        %p154 = pneg %p48
      $region14: #{main_model_forward.1} parent=11 // pred_check_branch
        %156 = sbr.rel (%p154) target = $region16
      $region15: #{main_model_forward.1} parent=11 // pred_region
        %p157 = scmp.lt.s32.totalorder %s20, 0
        %s158 = scalar_select %p157, %s20, 0
        %s159 = smul.addr %s158, 4
        %s160 = scalar_lea.vmem %s0, %s159
      $region16: #{main_model_forward.1} parent=11 // pred_fallthru
        _
      // Predicated region
      $region17: #{main_model_forward.1} parent=11 // pred_check
        %p161 = pneg %p69
      $region18: #{main_model_forward.1} parent=11 // pred_check_branch
        %163 = sbr.rel (%p161) target = $region20
      $region19: #{main_model_forward.1} parent=11 // pred_region
        _
      $region20: #{main_model_forward.1} parent=11 // pred_fallthru
        _
      // Predicated region
      $region21: #{main_model_forward.1} parent=11 // pred_check
        %p164 = pneg %p90
      $region22: #{main_model_forward.1} parent=11 // pred_check_branch
        %166 = sbr.rel (%p164) target = $region24
      $region23: #{main_model_forward.1} parent=11 // pred_region
        _
      $region24: #{main_model_forward.1} parent=11 // pred_fallthru
        _
      // Predicated region
      $region25: #{main_model_forward.1} parent=11 // pred_check
        %p167 = pneg %p111
      $region26: #{main_model_forward.1} parent=11 // pred_check_branch
        %169 = sbr.rel (%p167) target = $region28
      $region27: #{main_model_forward.1} parent=11 // pred_region
        _
      $region28: #{main_model_forward.1} parent=11 // pred_fallthru
        _
    $region12: #{main_model_forward.1} parent=5 // pred_fallthru
      _
    %p170 = scmp.lt.s32.totalorder %s10, 2
    // Predicated region
    $region29: #{main_model_forward.1} parent=5 // pred_check
      %p171 = pneg %p170
    $region30: #{main_model_forward.1} parent=5 // pred_check_branch
      %173 = sbr.rel (%p171) target = $region32
    $region31: #{main_model_forward.1} parent=5 // pred_region
      _
    $region32: #{main_model_forward.1} parent=5 // pred_fallthru
      _
    %p174 = scmp.le.s32.totalorder 1, %s10
    %p175 = scmp.lt.s32.totalorder %s10, 3
    %p176 = pnand %p174, %p175
    %p177 = pneg %p176
    // Predicated region
    $region33: #{main_model_forward.1} parent=5 // pred_check
      _
    $region34: #{main_model_forward.1} parent=5 // pred_check_branch
      %179 = sbr.rel (%p176) target = $region36
    $region35: #{main_model_forward.1} parent=5 // pred_region
      %s180 = ssub.s32 %s10, 1
      %p181 = scmp.lt.s32.totalorder %s20, 0
      %s182 = scalar_select %p181, %s20, 0
      %s183 = smul.addr %s182, 4
      %s184 = scalar_lea.vmem %s0, %s183
      %p185 = pneg %p48
      %p186 = pneg %p45
      %p187 = pneg %p69
      %p188 = pneg %p66
      %p189 = pneg %p90
      %p190 = pneg %p87
      %p191 = pneg %p111
      %p192 = pneg %p108
      %p193 = pneg %p139
      %p194 = pneg %p136
      %s195 = smul.u32 %s19, %s20
      %p196 = scmp.lt.s32.totalorder %s195, 0
      %s197 = scalar_select %p196, %s195, 0
      %s198 = smul.addr %s197, 8
      %s199 = scalar_lea.vmem %s4, %s198
      %p200 = scmp.lt.s32.totalorder %s20, 0
      %s201 = scalar_select %p200, %s20, 0
      %s202 = smul.addr %s201, 4
      %s203 = scalar_lea.vmem %s0, %s202
      %s204 = smul.u32 %s19, %s20
      %p205 = scmp.lt.s32.totalorder %s204, 0
      %s206 = scalar_select %p205, %s204, 0
      %s207 = smul.addr %s206, 8
      %s208 = scalar_lea.vmem %s4, %s207
      %s209 = smul.u32 %s19, %s20
      %v211 = vld [vmem:[%s1] sm:$0xff]
      %v212 = vld [vmem:[%s1 + $0x8] sm:$0xff]
      %v213 = vld [vmem:[%s1 + $0x10] sm:$0xff]
      %v214 = vld [vmem:[%s1 + $0x18] sm:$0xff]
      %v215 = vld [vmem:[%s203] sm:$0xf]
      %v216 = vld [vmem:[%s203 + $0x4] sm:$0xf]
      %v217 = vld [vmem:[%s203 + $0x8] sm:$0xf]
      %v218 = vld [vmem:[%s203 + $0xc] sm:$0xf]
      %v219 = vunpack.c.l.bf16 %v215
      %v220 = vunpack.c.l.bf16 %v216
      %v221 = vunpack.c.l.bf16 %v217
      %v222 = vunpack.c.l.bf16 %v218
      %vm223 = vcmask 261120
      %v225 = vsel %vm223, %v211, 0
      %v228 = vsel %vm223, %v212, 0
      %v231 = vsel %vm223, %v213, 0
      %v234 = vsel %vm223, %v214, 0
      %236 = vmatprep.subr.mxu0 0.0
      %237 = vmatpush1.msra.mxu0 %v219
      %238 = vmatprep.subr.mxu0 0.0
      %239 = vmatpush1.msra.mxu0 %v220
      %240 = vmatprep.subr.mxu0 0.0
      %241 = vmatpush1.msra.mxu0 %v221
      %242 = vmatprep.subr.mxu0 0.0
      %243 = vmatpush1.msra.mxu0 %v222
      %244 = vmatprep.subr.mxu0 0.0
      %245 = vmatpush1.msra.mxu0 0.0
      %246 = vmatprep.subr.mxu0 0.0
      %247 = vmatpush1.msra.mxu0 0.0
      %248 = vmatprep.subr.mxu0 0.0
      %249 = vmatpush1.msra.mxu0 0.0
      %250 = vmatprep.subr.mxu0 0.0
      %251 = vmatpush1.msra.mxu0 0.0
      %252 = vmatprep.subr.mxu0 0.0
      %253 = vmatpush1.msra.mxu0 0.0
      %254 = vmatprep.subr.mxu0 0.0
      %255 = vmatpush1.msra.mxu0 0.0
      %256 = vmatprep.subr.mxu0 0.0
      %257 = vmatpush1.msra.mxu0 0.0
      %258 = vmatprep.subr.mxu0 0.0
      %259 = vmatpush1.msra.mxu0 0.0
      %260 = vmatprep.subr.mxu0 0.0
      %261 = vmatpush1.msra.mxu0 0.0
      %262 = vmatprep.subr.mxu0 0.0
      %263 = vmatpush1.msra.mxu0 0.0
      %264 = vmatprep.subr.mxu0 0.0
      %265 = vmatpush1.msra.mxu0 0.0
      %266 = vmatprep.subr.mxu0 0.0
      %267 = vmatpush1.msra.mxu0 0.0
      %268 = vmatprep.subr.mxu0 0.0
      %269 = vmatpush1.msra.mxu0 0.0
      %270 = vmatprep.subr.mxu0 0.0
      %271 = vmatpush1.msra.mxu0 0.0
      %272 = vmatprep.subr.mxu0 0.0
      %273 = vmatpush1.msra.mxu0 0.0
      %274 = vmatprep.subr.mxu0 0.0
      %275 = vmatpush1.msra.mxu0 0.0
      %276 = vmatprep.subr.mxu0 0.0
      %277 = vmatpush1.msra.mxu0 0.0
      %278 = vmatprep.subr.mxu0 0.0
      %279 = vmatpush1.msra.mxu0 0.0
      %280 = vmatprep.subr.mxu0 0.0
      %281 = vmatpush1.msra.mxu0 0.0
      %282 = vmatprep.subr.mxu0 0.0
      %283 = vmatpush1.msra.mxu0 0.0
      %284 = vmatprep.subr.mxu0 0.0
      %285 = vmatpush1.msra.mxu0 0.0
      %286 = vmatprep.subr.mxu0 0.0
      %287 = vmatpush1.msra.mxu0 0.0
      %288 = vmatprep.subr.mxu0 0.0
      %289 = vmatpush1.msra.mxu0 0.0
      %290 = vmatprep.subr.mxu0 0.0
      %291 = vmatpush1.msra.mxu0 0.0
      %292 = vmatprep.subr.mxu0 0.0
      %293 = vmatpush1.msra.mxu0 0.0
      %294 = vmatprep.subr.mxu0 0.0
      %295 = vmatpush1.msra.mxu0 0.0
      %296 = vmatprep.subr.mxu0 0.0
      %297 = vmatpush1.msra.mxu0 0.0
      %298 = vmatprep.subr.mxu0 0.0
      %299 = vmatpush1.msra.mxu0 0.0
      %300 = vmatprep.mubr.f32.mxu0 0.0
      %301 = vmatmul.mubr.f32.gmra.mrb[0].mxu0 %v225
      %v302 = vpop.f32.mrb[0].mxu0
      %v303 = vadd.f32 0.0, %v302
      %v304 = vpop.f32.mrb[0].mxu0
      %305 = vmatprep.mubr.f32.mxu0 0.0
      %306 = vmatmul.mubr.f32.gmra.mrb[0].mxu0 %v228
      %v307 = vpop.f32.mrb[0].mxu0
      %v308 = vadd.f32 0.0, %v307
      %v309 = vpop.f32.mrb[0].mxu0
      %310 = vmatprep.mubr.f32.mxu0 0.0
      %311 = vmatmul.mubr.f32.gmra.mrb[0].mxu0 %v231
      %v312 = vpop.f32.mrb[0].mxu0
      %v313 = vadd.f32 0.0, %v312
      %v314 = vpop.f32.mrb[0].mxu0
      %315 = vmatprep.mubr.f32.mxu0 0.0
      %316 = vmatmul.mubr.f32.gmra.mrb[0].mxu0 %v234
      %v317 = vpop.f32.mrb[0].mxu0
      %v318 = vadd.f32 0.0, %v317
      %v319 = vpop.f32.mrb[0].mxu0
      %320 = vdwg.mxu0
      %s321 = scalar_lea.vmem %s203, 16
      %v322 = vld [vmem:[%s321] sm:$0xf]
      %v323 = vld [vmem:[%s321 + $0x4] sm:$0xf]
      %v324 = vld [vmem:[%s321 + $0x8] sm:$0xf]
      %v325 = vld [vmem:[%s321 + $0xc] sm:$0xf]
      %v326 = vunpack.c.l.bf16 %v322
      %v327 = vunpack.c.l.bf16 %v323
      %v328 = vunpack.c.l.bf16 %v324
      %v329 = vunpack.c.l.bf16 %v325
      %330 = vmatprep.subr.mxu0 0.0
      %331 = vmatpush1.msra.mxu0 %v326
      %332 = vmatprep.subr.mxu0 0.0
      %333 = vmatpush1.msra.mxu0 %v327
      %334 = vmatprep.subr.mxu0 0.0
      %335 = vmatpush1.msra.mxu0 %v328
      %336 = vmatprep.subr.mxu0 0.0
      %337 = vmatpush1.msra.mxu0 %v329
      %338 = vmatprep.subr.mxu0 0.0
      %339 = vmatpush1.msra.mxu0 0.0
      %340 = vmatprep.subr.mxu0 0.0
      %341 = vmatpush1.msra.mxu0 0.0
      %342 = vmatprep.subr.mxu0 0.0
      %343 = vmatpush1.msra.mxu0 0.0
      %344 = vmatprep.subr.mxu0 0.0
      %345 = vmatpush1.msra.mxu0 0.0
      %346 = vmatprep.subr.mxu0 0.0
      %347 = vmatpush1.msra.mxu0 0.0
      %348 = vmatprep.subr.mxu0 0.0
      %349 = vmatpush1.msra.mxu0 0.0
      %350 = vmatprep.subr.mxu0 0.0
      %351 = vmatpush1.msra.mxu0 0.0
      %352 = vmatprep.subr.mxu0 0.0
      %353 = vmatpush1.msra.mxu0 0.0
      %354 = vmatprep.subr.mxu0 0.0
      %355 = vmatpush1.msra.mxu0 0.0
      %356 = vmatprep.subr.mxu0 0.0
      %357 = vmatpush1.msra.mxu0 0.0
      %358 = vmatprep.subr.mxu0 0.0
      %359 = vmatpush1.msra.mxu0 0.0
      %360 = vmatprep.subr.mxu0 0.0
      %361 = vmatpush1.msra.mxu0 0.0
      %362 = vmatprep.subr.mxu0 0.0
      %363 = vmatpush1.msra.mxu0 0.0
      %364 = vmatprep.subr.mxu0 0.0
      %365 = vmatpush1.msra.mxu0 0.0
      %366 = vmatprep.subr.mxu0 0.0
      %367 = vmatpush1.msra.mxu0 0.0
      %368 = vmatprep.subr.mxu0 0.0
      %369 = vmatpush1.msra.mxu0 0.0
      %370 = vmatprep.subr.mxu0 0.0
      %371 = vmatpush1.msra.mxu0 0.0
      %372 = vmatprep.subr.mxu0 0.0
      %373 = vmatpush1.msra.mxu0 0.0
      %374 = vmatprep.subr.mxu0 0.0
      %375 = vmatpush1.msra.mxu0 0.0
      %376 = vmatprep.subr.mxu0 0.0
      %377 = vmatpush1.msra.mxu0 0.0
      %378 = vmatprep.subr.mxu0 0.0
      %379 = vmatpush1.msra.mxu0 0.0
      %380 = vmatprep.subr.mxu0 0.0
      %381 = vmatpush1.msra.mxu0 0.0
      %382 = vmatprep.subr.mxu0 0.0
      %383 = vmatpush1.msra.mxu0 0.0
      %384 = vmatprep.subr.mxu0 0.0
      %385 = vmatpush1.msra.mxu0 0.0
      %386 = vmatprep.subr.mxu0 0.0
      %387 = vmatpush1.msra.mxu0 0.0
      %388 = vmatprep.subr.mxu0 0.0
      %389 = vmatpush1.msra.mxu0 0.0
      %390 = vmatprep.subr.mxu0 0.0
      %391 = vmatpush1.msra.mxu0 0.0
      %392 = vmatprep.subr.mxu0 0.0
      %393 = vmatpush1.msra.mxu0 0.0
      %394 = vmatprep.mubr.f32.mxu0 0.0
      %395 = vmatmul.mubr.f32.gmra.mrb[0].mxu0 %v225
      %v396 = vpop.f32.mrb[0].mxu0
      %v397 = vadd.f32 0.0, %v396
      %v398 = vpop.f32.mrb[0].mxu0
      %399 = vmatprep.mubr.f32.mxu0 0.0
      %400 = vmatmul.mubr.f32.gmra.mrb[0].mxu0 %v228
      %v401 = vpop.f32.mrb[0].mxu0
      %v402 = vadd.f32 0.0, %v401
      %v403 = vpop.f32.mrb[0].mxu0
      %404 = vmatprep.mubr.f32.mxu0 0.0
      %405 = vmatmul.mubr.f32.gmra.mrb[0].mxu0 %v231
      %v406 = vpop.f32.mrb[0].mxu0
      %v407 = vadd.f32 0.0, %v406
      %v408 = vpop.f32.mrb[0].mxu0
      %409 = vmatprep.mubr.f32.mxu0 0.0
      %410 = vmatmul.mubr.f32.gmra.mrb[0].mxu0 %v234
      %v411 = vpop.f32.mrb[0].mxu0
      %v412 = vadd.f32 0.0, %v411
      %v413 = vpop.f32.mrb[0].mxu0
      %414 = vdwg.mxu0
      %s415 = scalar_lea.vmem %s203, 32
      %v416 = vld [vmem:[%s415] sm:$0xf]
      %v417 = vld [vmem:[%s415 + $0x4] sm:$0xf]
      %v418 = vld [vmem:[%s415 + $0x8] sm:$0xf]
      %v419 = vld [vmem:[%s415 + $0xc] sm:$0xf]
      %v420 = vunpack.c.l.bf16 %v416
      %v421 = vunpack.c.l.bf16 %v417
      %v422 = vunpack.c.l.bf16 %v418
      %v423 = vunpack.c.l.bf16 %v419
      %424 = vmatprep.subr.mxu0 0.0
      %425 = vmatpush1.msra.mxu0 %v420
      %426 = vmatprep.subr.mxu0 0.0
      %427 = vmatpush1.msra.mxu0 %v421
      %428 = vmatprep.subr.mxu0 0.0
      %429 = vmatpush1.msra.mxu0 %v422
      %430 = vmatprep.subr.mxu0 0.0
      %431 = vmatpush1.msra.mxu0 %v423
      %432 = vmatprep.subr.mxu0 0.0
      %433 = vmatpush1.msra.mxu0 0.0
      %434 = vmatprep.subr.mxu0 0.0
      %435 = vmatpush1.msra.mxu0 0.0
      %436 = vmatprep.subr.mxu0 0.0
      %437 = vmatpush1.msra.mxu0 0.0
      %438 = vmatprep.subr.mxu0 0.0
      %439 = vmatpush1.msra.mxu0 0.0
      %440 = vmatprep.subr.mxu0 0.0
      %441 = vmatpush1.msra.mxu0 0.0
      %442 = vmatprep.subr.mxu0 0.0
      %443 = vmatpush1.msra.mxu0 0.0
      %444 = vmatprep.subr.mxu0 0.0
      %445 = vmatpush1.msra.mxu0 0.0
      %446 = vmatprep.subr.mxu0 0.0
      %447 = vmatpush1.msra.mxu0 0.0
      %448 = vmatprep.subr.mxu0 0.0
      %449 = vmatpush1.msra.mxu0 0.0
      %450 = vmatprep.subr.mxu0 0.0
      %451 = vmatpush1.msra.mxu0 0.0
      %452 = vmatprep.subr.mxu0 0.0
      %453 = vmatpush1.msra.mxu0 0.0
      %454 = vmatprep.subr.mxu0 0.0
      %455 = vmatpush1.msra.mxu0 0.0
      %456 = vmatprep.subr.mxu0 0.0
      %457 = vmatpush1.msra.mxu0 0.0
      %458 = vmatprep.subr.mxu0 0.0
      %459 = vmatpush1.msra.mxu0 0.0
      %460 = vmatprep.subr.mxu0 0.0
      %461 = vmatpush1.msra.mxu0 0.0
      %462 = vmatprep.subr.mxu0 0.0
      %463 = vmatpush1.msra.mxu0 0.0
      %464 = vmatprep.subr.mxu0 0.0
      %465 = vmatpush1.msra.mxu0 0.0
      %466 = vmatprep.subr.mxu0 0.0
      %467 = vmatpush1.msra.mxu0 0.0
      %468 = vmatprep.subr.mxu0 0.0
      %469 = vmatpush1.msra.mxu0 0.0
      %470 = vmatprep.subr.mxu0 0.0
      %471 = vmatpush1.msra.mxu0 0.0
      %472 = vmatprep.subr.mxu0 0.0
      %473 = vmatpush1.msra.mxu0 0.0
      %474 = vmatprep.subr.mxu0 0.0
      %475 = vmatpush1.msra.mxu0 0.0
      %476 = vmatprep.subr.mxu0 0.0
      %477 = vmatpush1.msra.mxu0 0.0
      %478 = vmatprep.subr.mxu0 0.0
      %479 = vmatpush1.msra.mxu0 0.0
      %480 = vmatprep.subr.mxu0 0.0
      %481 = vmatpush1.msra.mxu0 0.0
      %482 = vmatprep.subr.mxu0 0.0
      %483 = vmatpush1.msra.mxu0 0.0
      %484 = vmatprep.subr.mxu0 0.0
      %485 = vmatpush1.msra.mxu0 0.0
      %486 = vmatprep.subr.mxu0 0.0
      %487 = vmatpush1.msra.mxu0 0.0
      %488 = vmatprep.mubr.f32.mxu0 0.0
      %489 = vmatmul.mubr.f32.gmra.mrb[0].mxu0 %v225
      %v490 = vpop.f32.mrb[0].mxu0
      %v491 = vadd.f32 0.0, %v490
      %v492 = vpop.f32.mrb[0].mxu0
      %493 = vmatprep.mubr.f32.mxu0 0.0
      %494 = vmatmul.mubr.f32.gmra.mrb[0].mxu0 %v228
      %v495 = vpop.f32.mrb[0].mxu0
      %v496 = vadd.f32 0.0, %v495
      %v497 = vpop.f32.mrb[0].mxu0
      %498 = vmatprep.mubr.f32.mxu0 0.0
      %499 = vmatmul.mubr.f32.gmra.mrb[0].mxu0 %v231
      %v500 = vpop.f32.mrb[0].mxu0
      %v501 = vadd.f32 0.0, %v500
      %v502 = vpop.f32.mrb[0].mxu0
      %503 = vmatprep.mubr.f32.mxu0 0.0
      %504 = vmatmul.mubr.f32.gmra.mrb[0].mxu0 %v234
      %v505 = vpop.f32.mrb[0].mxu0
      %v506 = vadd.f32 0.0, %v505
      %v507 = vpop.f32.mrb[0].mxu0
      %508 = vdwg.mxu0
      %s509 = scalar_lea.vmem %s203, 48
      %v510 = vld [vmem:[%s509] sm:$0xf]
      %v511 = vld [vmem:[%s509 + $0x4] sm:$0xf]
      %v512 = vld [vmem:[%s509 + $0x8] sm:$0xf]
      %v513 = vld [vmem:[%s509 + $0xc] sm:$0xf]
      %v514 = vunpack.c.l.bf16 %v510
      %v515 = vunpack.c.l.bf16 %v511
      %v516 = vunpack.c.l.bf16 %v512
      %v517 = vunpack.c.l.bf16 %v513
      %518 = vmatprep.subr.mxu0 0.0
      %519 = vmatpush1.msra.mxu0 %v514
      %520 = vmatprep.subr.mxu0 0.0
      %521 = vmatpush1.msra.mxu0 %v515
      %522 = vmatprep.subr.mxu0 0.0
      %523 = vmatpush1.msra.mxu0 %v516
      %524 = vmatprep.subr.mxu0 0.0
      %525 = vmatpush1.msra.mxu0 %v517
      %526 = vmatprep.subr.mxu0 0.0
      %527 = vmatpush1.msra.mxu0 0.0
      %528 = vmatprep.subr.mxu0 0.0
      %529 = vmatpush1.msra.mxu0 0.0
      %530 = vmatprep.subr.mxu0 0.0
      %531 = vmatpush1.msra.mxu0 0.0
      %532 = vmatprep.subr.mxu0 0.0
      %533 = vmatpush1.msra.mxu0 0.0
      %534 = vmatprep.subr.mxu0 0.0
      %535 = vmatpush1.msra.mxu0 0.0
      %536 = vmatprep.subr.mxu0 0.0
      %537 = vmatpush1.msra.mxu0 0.0
      %538 = vmatprep.subr.mxu0 0.0
      %539 = vmatpush1.msra.mxu0 0.0
      %540 = vmatprep.subr.mxu0 0.0
      %541 = vmatpush1.msra.mxu0 0.0
      %542 = vmatprep.subr.mxu0 0.0
      %543 = vmatpush1.msra.mxu0 0.0
      %544 = vmatprep.subr.mxu0 0.0
      %545 = vmatpush1.msra.mxu0 0.0
      %546 = vmatprep.subr.mxu0 0.0
      %547 = vmatpush1.msra.mxu0 0.0
      %548 = vmatprep.subr.mxu0 0.0
      %549 = vmatpush1.msra.mxu0 0.0
      %550 = vmatprep.subr.mxu0 0.0
      %551 = vmatpush1.msra.mxu0 0.0
      %552 = vmatprep.subr.mxu0 0.0
      %553 = vmatpush1.msra.mxu0 0.0
      %554 = vmatprep.subr.mxu0 0.0
      %555 = vmatpush1.msra.mxu0 0.0
      %556 = vmatprep.subr.mxu0 0.0
      %557 = vmatpush1.msra.mxu0 0.0
      %558 = vmatprep.subr.mxu0 0.0
      %559 = vmatpush1.msra.mxu0 0.0
      %560 = vmatprep.subr.mxu0 0.0
      %561 = vmatpush1.msra.mxu0 0.0
      %562 = vmatprep.subr.mxu0 0.0
      %563 = vmatpush1.msra.mxu0 0.0
      %564 = vmatprep.subr.mxu0 0.0
      %565 = vmatpush1.msra.mxu0 0.0
      %566 = vmatprep.subr.mxu0 0.0
      %567 = vmatpush1.msra.mxu0 0.0
      %568 = vmatprep.subr.mxu0 0.0
      %569 = vmatpush1.msra.mxu0 0.0
      %570 = vmatprep.subr.mxu0 0.0
      %571 = vmatpush1.msra.mxu0 0.0
      %572 = vmatprep.subr.mxu0 0.0
      %573 = vmatpush1.msra.mxu0 0.0
      %574 = vmatprep.subr.mxu0 0.0
      %575 = vmatpush1.msra.mxu0 0.0
      %576 = vmatprep.subr.mxu0 0.0
      %577 = vmatpush1.msra.mxu0 0.0
      %578 = vmatprep.subr.mxu0 0.0
      %579 = vmatpush1.msra.mxu0 0.0
      %580 = vmatprep.subr.mxu0 0.0
      %581 = vmatpush1.msra.mxu0 0.0
      %582 = vmatprep.mubr.f32.mxu0 0.0
      %583 = vmatmul.mubr.f32.gmra.mrb[0].mxu0 %v225
      %v584 = vpop.f32.mrb[0].mxu0
      %v585 = vadd.f32 0.0, %v584
      %v586 = vpop.f32.mrb[0].mxu0
      %587 = vmatprep.mubr.f32.mxu0 0.0
      %588 = vmatmul.mubr.f32.gmra.mrb[0].mxu0 %v228
      %v589 = vpop.f32.mrb[0].mxu0
      %v590 = vadd.f32 0.0, %v589
      %v591 = vpop.f32.mrb[0].mxu0
      %592 = vmatprep.mubr.f32.mxu0 0.0
      %593 = vmatmul.mubr.f32.gmra.mrb[0].mxu0 %v231
      %v594 = vpop.f32.mrb[0].mxu0
      %v595 = vadd.f32 0.0, %v594
      %v596 = vpop.f32.mrb[0].mxu0
      %597 = vmatprep.mubr.f32.mxu0 0.0
      %598 = vmatmul.mubr.f32.gmra.mrb[0].mxu0 %v234
      %v599 = vpop.f32.mrb[0].mxu0
      %v600 = vadd.f32 0.0, %v599
      %v601 = vpop.f32.mrb[0].mxu0
      %602 = vdwg.mxu0
      %p603 = scmp.eq.s32.totalorder %s19, 0
      // Predicated region
      $region37: #{main_model_forward.1} parent=35 // pred_check
        %p604 = pneg %p603
      $region38: #{main_model_forward.1} parent=35 // pred_check_branch
        %606 = sbr.rel (%p604) target = $region40
      $region39: #{main_model_forward.1} parent=35 // pred_region
        %vm607 = vcmask 523264
        %v608 = vsel %vm607, %v303, 0.0
        %609 = vadd.xlane.f32.xlu0 %v608
        %v610 = vpop.xlane.xlu0 %609
        %v611 = vsel %vm607, %v308, 0.0
        %612 = vadd.xlane.f32.xlu0 %v611
        %v613 = vpop.xlane.xlu0 %612
        %v614 = vsel %vm607, %v313, 0.0
        %615 = vadd.xlane.f32.xlu0 %v614
        %v616 = vpop.xlane.xlu0 %615
        %v617 = vsel %vm607, %v318, 0.0
        %618 = vadd.xlane.f32.xlu0 %v617
        %v619 = vpop.xlane.xlu0 %618
        %v620 = vmul.f32 %v303, %v303
        %v621 = vmul.f32 %v308, %v308
        %v622 = vmul.f32 %v313, %v313
        %v623 = vmul.f32 %v318, %v318
        %v624 = vsel %vm607, %v620, 0.0
        %625 = vadd.xlane.f32.xlu0 %v624
        %v626 = vpop.xlane.xlu0 %625
        %v627 = vsel %vm607, %v621, 0.0
        %628 = vadd.xlane.f32.xlu0 %v627
        %v629 = vpop.xlane.xlu0 %628
        %v630 = vsel %vm607, %v622, 0.0
        %631 = vadd.xlane.f32.xlu0 %v630
        %v632 = vpop.xlane.xlu0 %631
        %v633 = vsel %vm607, %v623, 0.0
        %634 = vadd.xlane.f32.xlu0 %v633
        %v635 = vpop.xlane.xlu0 %634
        %v636 = vsel %vm607, %v397, 0.0
        %637 = vadd.xlane.f32.xlu0 %v636
        %v638 = vpop.xlane.xlu0 %637
        %v639 = vsel %vm607, %v402, 0.0
        %640 = vadd.xlane.f32.xlu0 %v639
        %v641 = vpop.xlane.xlu0 %640
        %v642 = vsel %vm607, %v407, 0.0
        %643 = vadd.xlane.f32.xlu0 %v642
        %v644 = vpop.xlane.xlu0 %643
        %v645 = vsel %vm607, %v412, 0.0
        %646 = vadd.xlane.f32.xlu0 %v645
        %v647 = vpop.xlane.xlu0 %646
        %v648 = vadd.f32 %v610, %v638
        %v649 = vadd.f32 %v613, %v641
        %v650 = vadd.f32 %v616, %v644
        %v651 = vadd.f32 %v619, %v647
        %v652 = vmul.f32 %v397, %v397
        %v653 = vmul.f32 %v402, %v402
        %v654 = vmul.f32 %v407, %v407
        %v655 = vmul.f32 %v412, %v412
        %v656 = vsel %vm607, %v652, 0.0
        %657 = vadd.xlane.f32.xlu0 %v656
        %v658 = vpop.xlane.xlu0 %657
        %v659 = vsel %vm607, %v653, 0.0
        %660 = vadd.xlane.f32.xlu0 %v659
        %v661 = vpop.xlane.xlu0 %660
        %v662 = vsel %vm607, %v654, 0.0
        %663 = vadd.xlane.f32.xlu0 %v662
        %v664 = vpop.xlane.xlu0 %663
        %v665 = vsel %vm607, %v655, 0.0
        %666 = vadd.xlane.f32.xlu0 %v665
        %v667 = vpop.xlane.xlu0 %666
        %v668 = vadd.f32 %v626, %v658
        %v669 = vadd.f32 %v629, %v661
        %v670 = vadd.f32 %v632, %v664
        %v671 = vadd.f32 %v635, %v667
        %v672 = vsel %vm607, %v491, 0.0
        %673 = vadd.xlane.f32.xlu0 %v672
        %v674 = vpop.xlane.xlu0 %673
        %v675 = vsel %vm607, %v496, 0.0
        %676 = vadd.xlane.f32.xlu0 %v675
        %v677 = vpop.xlane.xlu0 %676
        %v678 = vsel %vm607, %v501, 0.0
        %679 = vadd.xlane.f32.xlu0 %v678
        %v680 = vpop.xlane.xlu0 %679
        %v681 = vsel %vm607, %v506, 0.0
        %682 = vadd.xlane.f32.xlu0 %v681
        %v683 = vpop.xlane.xlu0 %682
        %v684 = vadd.f32 %v648, %v674
        %v685 = vadd.f32 %v649, %v677
        %v686 = vadd.f32 %v650, %v680
        %v687 = vadd.f32 %v651, %v683
        %v688 = vmul.f32 %v491, %v491
        %v689 = vmul.f32 %v496, %v496
        %v690 = vmul.f32 %v501, %v501
        %v691 = vmul.f32 %v506, %v506
        %v692 = vsel %vm607, %v688, 0.0
        %693 = vadd.xlane.f32.xlu0 %v692
        %v694 = vpop.xlane.xlu0 %693
        %v695 = vsel %vm607, %v689, 0.0
        %696 = vadd.xlane.f32.xlu0 %v695
        %v697 = vpop.xlane.xlu0 %696
        %v698 = vsel %vm607, %v690, 0.0
        %699 = vadd.xlane.f32.xlu0 %v698
        %v700 = vpop.xlane.xlu0 %699
        %v701 = vsel %vm607, %v691, 0.0
        %702 = vadd.xlane.f32.xlu0 %v701
        %v703 = vpop.xlane.xlu0 %702
        %v704 = vadd.f32 %v668, %v694
        %v705 = vadd.f32 %v669, %v697
        %v706 = vadd.f32 %v670, %v700
        %v707 = vadd.f32 %v671, %v703
        %v708 = vsel %vm607, %v585, 0.0
        %709 = vadd.xlane.f32.xlu0 %v708
        %v710 = vpop.xlane.xlu0 %709
        %v711 = vsel %vm607, %v590, 0.0
        %712 = vadd.xlane.f32.xlu0 %v711
        %v713 = vpop.xlane.xlu0 %712
        %v714 = vsel %vm607, %v595, 0.0
        %715 = vadd.xlane.f32.xlu0 %v714
        %v716 = vpop.xlane.xlu0 %715
        %v717 = vsel %vm607, %v600, 0.0
        %718 = vadd.xlane.f32.xlu0 %v717
        %v719 = vpop.xlane.xlu0 %718
        %v720 = vadd.f32 %v684, %v710
        %v721 = vadd.f32 %v685, %v713
        %v722 = vadd.f32 %v686, %v716
        %v723 = vadd.f32 %v687, %v719
        %v724 = vmul.f32 %v585, %v585
        %v725 = vmul.f32 %v590, %v590
        %v726 = vmul.f32 %v595, %v595
        %v727 = vmul.f32 %v600, %v600
        %v728 = vsel %vm607, %v724, 0.0
        %729 = vadd.xlane.f32.xlu0 %v728
        %v730 = vpop.xlane.xlu0 %729
        %v731 = vsel %vm607, %v725, 0.0
        %732 = vadd.xlane.f32.xlu0 %v731
        %v733 = vpop.xlane.xlu0 %732
        %v734 = vsel %vm607, %v726, 0.0
        %735 = vadd.xlane.f32.xlu0 %v734
        %v736 = vpop.xlane.xlu0 %735
        %v737 = vsel %vm607, %v727, 0.0
        %738 = vadd.xlane.f32.xlu0 %v737
        %v739 = vpop.xlane.xlu0 %738
        %v740 = vadd.f32 %v704, %v730
        %v741 = vadd.f32 %v705, %v733
        %v742 = vadd.f32 %v706, %v736
        %v743 = vadd.f32 %v707, %v739
        %p744 = scmp.eq.s32.totalorder %s20, 0
        // Predicated region
        $region41: #{main_model_forward.1} parent=39 // pred_check
          %p745 = pneg %p744
        $region42: #{main_model_forward.1} parent=39 // pred_check_branch
          %747 = sbr.rel (%p745) target = $region44
        $region43: #{main_model_forward.1} parent=39 // pred_region
          %vm748 = vcmask 7168
          %749 = vst.msk [vmem:[#allocation2] sm:$0xff] %vm748, %v720
          %750 = vst.msk [vmem:[#allocation2 + $0x8] sm:$0xff] %vm748, %v721
          %751 = vst.msk [vmem:[#allocation2 + $0x10] sm:$0xff] %vm748, %v722
          %752 = vst.msk [vmem:[#allocation2 + $0x18] sm:$0xff] %vm748, %v723
          %753 = vst.msk [vmem:[#allocation3] sm:$0xff] %vm748, %v740
          %754 = vst.msk [vmem:[#allocation3 + $0x8] sm:$0xff] %vm748, %v741
          %755 = vst.msk [vmem:[#allocation3 + $0x10] sm:$0xff] %vm748, %v742
          %756 = vst.msk [vmem:[#allocation3 + $0x18] sm:$0xff] %vm748, %v743
        $region44: #{main_model_forward.1} parent=39 // pred_fallthru
          _
        %p757 = scmp.gt.s32.totalorder %s20, 0
        // Predicated region
        $region45: #{main_model_forward.1} parent=39 // pred_check
          %p758 = pneg %p757
        $region46: #{main_model_forward.1} parent=39 // pred_check_branch
          %760 = sbr.rel (%p758) target = $region48
        $region47: #{main_model_forward.1} parent=39 // pred_region
          %v761 = vld [vmem:[#allocation2] sm:$0xff]
          %v762 = vld [vmem:[#allocation2 + $0x8] sm:$0xff]
          %v763 = vld [vmem:[#allocation2 + $0x10] sm:$0xff]
          %v764 = vld [vmem:[#allocation2 + $0x18] sm:$0xff]
          %v765 = vadd.f32 %v761, %v720
          %v766 = vadd.f32 %v762, %v721
          %v767 = vadd.f32 %v763, %v722
          %v768 = vadd.f32 %v764, %v723
          %vm769 = vcmask 7168
          %770 = vst.msk [vmem:[#allocation2] sm:$0xff] %vm769, %v765
          %771 = vst.msk [vmem:[#allocation2 + $0x8] sm:$0xff] %vm769, %v766
          %772 = vst.msk [vmem:[#allocation2 + $0x10] sm:$0xff] %vm769, %v767
          %773 = vst.msk [vmem:[#allocation2 + $0x18] sm:$0xff] %vm769, %v768
          %v774 = vld [vmem:[#allocation3] sm:$0xff]
          %v775 = vld [vmem:[#allocation3 + $0x8] sm:$0xff]
          %v776 = vld [vmem:[#allocation3 + $0x10] sm:$0xff]
          %v777 = vld [vmem:[#allocation3 + $0x18] sm:$0xff]
          %v778 = vadd.f32 %v774, %v740
          %v779 = vadd.f32 %v775, %v741
          %v780 = vadd.f32 %v776, %v742
          %v781 = vadd.f32 %v777, %v743
          %782 = vst.msk [vmem:[#allocation3] sm:$0xff] %vm769, %v778
          %783 = vst.msk [vmem:[#allocation3 + $0x8] sm:$0xff] %vm769, %v779
          %784 = vst.msk [vmem:[#allocation3 + $0x10] sm:$0xff] %vm769, %v780
          %785 = vst.msk [vmem:[#allocation3 + $0x18] sm:$0xff] %vm769, %v781
        $region48: #{main_model_forward.1} parent=39 // pred_fallthru
          _
      $region40: #{main_model_forward.1} parent=35 // pred_fallthru
        _
      %p786 = scmp.eq.s32.totalorder %s19, 1
      // Predicated region
      $region49: #{main_model_forward.1} parent=35 // pred_check
        %p787 = pneg %p786
      $region50: #{main_model_forward.1} parent=35 // pred_check_branch
        %789 = sbr.rel (%p787) target = $region52
      $region51: #{main_model_forward.1} parent=35 // pred_region
        %p790 = scmp.eq.s32.totalorder %s20, 0
        // Predicated region
        $region53: #{main_model_forward.1} parent=51 // pred_check
          %p791 = pneg %p790
        $region54: #{main_model_forward.1} parent=51 // pred_check_branch
          %793 = sbr.rel (%p791) target = $region56
        $region55: #{main_model_forward.1} parent=51 // pred_region
          %v794 = vld [vmem:[#allocation2] sm:$0xff]
          %v795 = vld [vmem:[#allocation2 + $0x8] sm:$0xff]
          %v796 = vld [vmem:[#allocation2 + $0x10] sm:$0xff]
          %v797 = vld [vmem:[#allocation2 + $0x18] sm:$0xff]
          %v798 = vmul.f32 %v794, 0.00390625
          %v799 = vmul.f32 %v795, 0.00390625
          %v800 = vmul.f32 %v796, 0.00390625
          %v801 = vmul.f32 %v797, 0.00390625
          %v802 = vld [vmem:[#allocation3] sm:$0xff]
          %v803 = vld [vmem:[#allocation3 + $0x8] sm:$0xff]
          %v804 = vld [vmem:[#allocation3 + $0x10] sm:$0xff]
          %v805 = vld [vmem:[#allocation3 + $0x18] sm:$0xff]
          %v806 = vmul.f32 %v802, 0.00390625
          %v807 = vmul.f32 %v803, 0.00390625
          %v808 = vmul.f32 %v804, 0.00390625
          %v809 = vmul.f32 %v805, 0.00390625
          %v810 = vmul.f32 %v798, %v798
          %v811 = vmul.f32 %v799, %v799
          %v812 = vmul.f32 %v800, %v800
          %v813 = vmul.f32 %v801, %v801
          %v814 = vsub.f32 %v806, %v810
          %v815 = vsub.f32 %v807, %v811
          %v816 = vsub.f32 %v808, %v812
          %v817 = vsub.f32 %v809, %v813
          %v818 = vld [vmem:[%s2] sm:$0xff]
          %v819 = vld [vmem:[%s2 + $0x8] sm:$0xff]
          %v820 = vld [vmem:[%s2 + $0x10] sm:$0xff]
          %v821 = vld [vmem:[%s2 + $0x18] sm:$0xff]
          %v822 = vadd.f32 %v814, 1e-05
          %v823 = vadd.f32 %v815, 1e-05
          %v824 = vadd.f32 %v816, 1e-05
          %v825 = vadd.f32 %v817, 1e-05
          %v826 = vrsqrt.pop %v822
          %v827 = vrsqrt.pop %v823
          %v828 = vrsqrt.pop %v824
          %v829 = vrsqrt.pop %v825
          %v830 = vmul.f32 %v818, %v826
          %v831 = vmul.f32 %v819, %v827
          %v832 = vmul.f32 %v820, %v828
          %v833 = vmul.f32 %v821, %v829
          %vm834 = vcmask 7168
          %835 = vst.msk [vmem:[#allocation4] sm:$0xff] %vm834, %v830
          %836 = vst.msk [vmem:[#allocation4 + $0x8] sm:$0xff] %vm834, %v831
          %837 = vst.msk [vmem:[#allocation4 + $0x10] sm:$0xff] %vm834, %v832
          %838 = vst.msk [vmem:[#allocation4 + $0x18] sm:$0xff] %vm834, %v833
          %v839 = vld [vmem:[%s2] sm:$0xff]
          %v840 = vld [vmem:[%s2 + $0x8] sm:$0xff]
          %v841 = vld [vmem:[%s2 + $0x10] sm:$0xff]
          %v842 = vld [vmem:[%s2 + $0x18] sm:$0xff]
          %v843 = vmul.f32 %v798, %v830
          %v844 = vmul.f32 %v799, %v831
          %v845 = vmul.f32 %v800, %v832
          %v846 = vmul.f32 %v801, %v833
          %851 = vrot.lane.b32.xlu0 %v843, 1
          %v852 = vpop.permute.xlu0 %851
          %853 = vrot.lane.b32.xlu0 %v844, 1
          %v854 = vpop.permute.xlu0 %853
          %855 = vrot.lane.b32.xlu0 %v845, 1
          %v856 = vpop.permute.xlu0 %855
          %857 = vrot.lane.b32.xlu0 %v846, 1
          %v858 = vpop.permute.xlu0 %857
          %v863 = vsub.f32 %v839, %v852
          %v864 = vsub.f32 %v840, %v854
          %v865 = vsub.f32 %v841, %v856
          %v866 = vsub.f32 %v842, %v858
          %871 = vrot.lane.b32.xlu0 %v863, 127
          %v872 = vpop.permute.xlu0 %871
          %873 = vrot.lane.b32.xlu0 %v864, 127
          %v874 = vpop.permute.xlu0 %873
          %875 = vrot.lane.b32.xlu0 %v865, 127
          %v876 = vpop.permute.xlu0 %875
          %877 = vrot.lane.b32.xlu0 %v866, 127
          %v878 = vpop.permute.xlu0 %877
          %883 = vst.msk [vmem:[#allocation5] sm:$0xff] %vm834, %v872
          %884 = vst.msk [vmem:[#allocation5 + $0x8] sm:$0xff] %vm834, %v874
          %885 = vst.msk [vmem:[#allocation5 + $0x10] sm:$0xff] %vm834, %v876
          %886 = vst.msk [vmem:[#allocation5 + $0x18] sm:$0xff] %vm834, %v878
        $region56: #{main_model_forward.1} parent=51 // pred_fallthru
          _
        %v887 = vld [vmem:[#allocation4] sm:$0xff]
        %v888 = vld [vmem:[#allocation4 + $0x8] sm:$0xff]
        %v889 = vld [vmem:[#allocation4 + $0x10] sm:$0xff]
        %v890 = vld [vmem:[#allocation4 + $0x18] sm:$0xff]
        %v891 = vld [vmem:[#allocation5] sm:$0xff]
        %v892 = vld [vmem:[#allocation5 + $0x8] sm:$0xff]
        %v893 = vld [vmem:[#allocation5 + $0x10] sm:$0xff]
        %v894 = vld [vmem:[#allocation5 + $0x18] sm:$0xff]
        %896 = vset.pattern.permute.xlu0 0
        %897 = vperm.xlu0 %896, %v887
        %v898 = vpop.permute.xlu0 %897
        %901 = vset.pattern.permute.xlu0 0
        %902 = vperm.xlu0 %901, %v888
        %v903 = vpop.permute.xlu0 %902
        %906 = vset.pattern.permute.xlu0 0
        %907 = vperm.xlu0 %906, %v889
        %v908 = vpop.permute.xlu0 %907
        %911 = vset.pattern.permute.xlu0 0
        %912 = vperm.xlu0 %911, %v890
        %v913 = vpop.permute.xlu0 %912
        %v915 = vmul.f32 %v303, %v898
        %v916 = vmul.f32 %v308, %v903
        %v917 = vmul.f32 %v313, %v908
        %v918 = vmul.f32 %v318, %v913
        %920 = vset.pattern.permute.xlu0 0
        %921 = vperm.xlu0 %920, %v891
        %v922 = vpop.permute.xlu0 %921
        %925 = vset.pattern.permute.xlu0 0
        %926 = vperm.xlu0 %925, %v892
        %v927 = vpop.permute.xlu0 %926
        %930 = vset.pattern.permute.xlu0 0
        %931 = vperm.xlu0 %930, %v893
        %v932 = vpop.permute.xlu0 %931
        %935 = vset.pattern.permute.xlu0 0
        %936 = vperm.xlu0 %935, %v894
        %v937 = vpop.permute.xlu0 %936
        %v939 = vadd.f32 %v915, %v922
        %v940 = vadd.f32 %v916, %v927
        %v941 = vadd.f32 %v917, %v932
        %v942 = vadd.f32 %v918, %v937
        %v943 = vpack.c.bf16 %v940, %v939
        %v944 = vpack.c.bf16 %v942, %v941
        %v945 = vmax.bf16 %v943, 0
        %v946 = vmax.bf16 %v944, 0
        %v947 = vmul.f32 %v397, %v898
        %v948 = vmul.f32 %v402, %v903
        %v949 = vmul.f32 %v407, %v908
        %v950 = vmul.f32 %v412, %v913
        %v951 = vadd.f32 %v947, %v922
        %v952 = vadd.f32 %v948, %v927
        %v953 = vadd.f32 %v949, %v932
        %v954 = vadd.f32 %v950, %v937
        %v955 = vpack.c.bf16 %v952, %v951
        %v956 = vpack.c.bf16 %v954, %v953
        %v957 = vmax.bf16 %v955, 0
        %v958 = vmax.bf16 %v956, 0
        %v959 = vmul.f32 %v491, %v898
        %v960 = vmul.f32 %v496, %v903
        %v961 = vmul.f32 %v501, %v908
        %v962 = vmul.f32 %v506, %v913
        %v963 = vadd.f32 %v959, %v922
        %v964 = vadd.f32 %v960, %v927
        %v965 = vadd.f32 %v961, %v932
        %v966 = vadd.f32 %v962, %v937
        %v967 = vpack.c.bf16 %v964, %v963
        %v968 = vpack.c.bf16 %v966, %v965
        %v969 = vmax.bf16 %v967, 0
        %v970 = vmax.bf16 %v968, 0
        %v971 = vmul.f32 %v585, %v898
        %v972 = vmul.f32 %v590, %v903
        %v973 = vmul.f32 %v595, %v908
        %v974 = vmul.f32 %v600, %v913
        %v975 = vadd.f32 %v971, %v922
        %v976 = vadd.f32 %v972, %v927
        %v977 = vadd.f32 %v973, %v932
        %v978 = vadd.f32 %v974, %v937
        %v979 = vpack.c.bf16 %v976, %v975
        %v980 = vpack.c.bf16 %v978, %v977
        %v981 = vmax.bf16 %v979, 0
        %v982 = vmax.bf16 %v980, 0
        %v983 = vmax.bf16 %v945, %v957
        %v984 = vmax.bf16 %v946, %v958
        %v985 = vmax.bf16 %v969, %v981
        %v986 = vmax.bf16 %v970, %v982
        %v987 = vmax.bf16 %v983, %v985
        %v988 = vmax.bf16 %v984, %v986
        %v989 = vld [vmem:[%s3] sm:$0xff]
        %v990 = vunpack.c.l.bf16 %v987
        %v991 = vunpack.c.h.bf16 %v987
        %v992 = vunpack.c.l.bf16 %v988
        %v993 = vunpack.c.h.bf16 %v988
        %v995 = vsel %vm223, %v989, 0
        %997 = vmatprep.subr.mxu0 0.0
        %998 = vmatpush1.msra.mxu0 %v990
        %999 = vmatprep.subr.mxu0 0.0
        %1000 = vmatpush1.msra.mxu0 %v991
        %1001 = vmatprep.subr.mxu0 0.0
        %1002 = vmatpush1.msra.mxu0 %v992
        %1003 = vmatprep.subr.mxu0 0.0
        %1004 = vmatpush1.msra.mxu0 %v993
        %1005 = vmatprep.subr.mxu0 0.0
        %1006 = vmatpush1.msra.mxu0 0.0
        %1007 = vmatprep.subr.mxu0 0.0
        %1008 = vmatpush1.msra.mxu0 0.0
        %1009 = vmatprep.subr.mxu0 0.0
        %1010 = vmatpush1.msra.mxu0 0.0
        %1011 = vmatprep.subr.mxu0 0.0
        %1012 = vmatpush1.msra.mxu0 0.0
        %1013 = vmatprep.subr.mxu0 0.0
        %1014 = vmatpush1.msra.mxu0 0.0
        %1015 = vmatprep.subr.mxu0 0.0
        %1016 = vmatpush1.msra.mxu0 0.0
        %1017 = vmatprep.subr.mxu0 0.0
        %1018 = vmatpush1.msra.mxu0 0.0
        %1019 = vmatprep.subr.mxu0 0.0
        %1020 = vmatpush1.msra.mxu0 0.0
        %1021 = vmatprep.subr.mxu0 0.0
        %1022 = vmatpush1.msra.mxu0 0.0
        %1023 = vmatprep.subr.mxu0 0.0
        %1024 = vmatpush1.msra.mxu0 0.0
        %1025 = vmatprep.subr.mxu0 0.0
        %1026 = vmatpush1.msra.mxu0 0.0
        %1027 = vmatprep.subr.mxu0 0.0
        %1028 = vmatpush1.msra.mxu0 0.0
        %1029 = vmatprep.subr.mxu0 0.0
        %1030 = vmatpush1.msra.mxu0 0.0
        %1031 = vmatprep.subr.mxu0 0.0
        %1032 = vmatpush1.msra.mxu0 0.0
        %1033 = vmatprep.subr.mxu0 0.0
        %1034 = vmatpush1.msra.mxu0 0.0
        %1035 = vmatprep.subr.mxu0 0.0
        %1036 = vmatpush1.msra.mxu0 0.0
        %1037 = vmatprep.subr.mxu0 0.0
        %1038 = vmatpush1.msra.mxu0 0.0
        %1039 = vmatprep.subr.mxu0 0.0
        %1040 = vmatpush1.msra.mxu0 0.0
        %1041 = vmatprep.subr.mxu0 0.0
        %1042 = vmatpush1.msra.mxu0 0.0
        %1043 = vmatprep.subr.mxu0 0.0
        %1044 = vmatpush1.msra.mxu0 0.0
        %1045 = vmatprep.subr.mxu0 0.0
        %1046 = vmatpush1.msra.mxu0 0.0
        %1047 = vmatprep.subr.mxu0 0.0
        %1048 = vmatpush1.msra.mxu0 0.0
        %1049 = vmatprep.subr.mxu0 0.0
        %1050 = vmatpush1.msra.mxu0 0.0
        %1051 = vmatprep.subr.mxu0 0.0
        %1052 = vmatpush1.msra.mxu0 0.0
        %1053 = vmatprep.subr.mxu0 0.0
        %1054 = vmatpush1.msra.mxu0 0.0
        %1055 = vmatprep.subr.mxu0 0.0
        %1056 = vmatpush1.msra.mxu0 0.0
        %1057 = vmatprep.subr.mxu0 0.0
        %1058 = vmatpush1.msra.mxu0 0.0
        %1059 = vmatprep.subr.mxu0 0.0
        %1060 = vmatpush1.msra.mxu0 0.0
        %1061 = vmatprep.mubr.f32.mxu0 0.0
        %1062 = vmatmul.mubr.f32.gmra.mrb[0].mxu0 %v995
        %v1063 = vpop.f32.mrb[0].mxu0
        %v1064 = vadd.f32 0.0, %v1063
        %v1065 = vpop.f32.mrb[0].mxu0
        %1066 = vdwg.mxu0
        %vm1067 = vcmask 523264
        %1068 = vst.msk [vmem:[%s208] sm:$0xff] %vm1067, %v1064
      $region52: #{main_model_forward.1} parent=35 // pred_fallthru
        _
      %s1069 = smul.u32 %s19, %s20
      %p1070 = scmp.lt.s32.totalorder %s1069, 0
      %s1071 = scalar_select %p1070, %s1069, 0
      %s1072 = smul.addr %s1071, 8
      %s1073 = scalar_lea.vmem %s4, %s1072
      // Predicated region
      $region57: #{main_model_forward.1} parent=35 // pred_check
        %p1074 = pneg %p136
      $region58: #{main_model_forward.1} parent=35 // pred_check_branch
        %1076 = sbr.rel (%p1074) target = $region60
      $region59: #{main_model_forward.1} parent=35 // pred_region
        %s1077 = smul.u32 %s19, %s20
      $region60: #{main_model_forward.1} parent=35 // pred_fallthru
        _
    $region36: #{main_model_forward.1} parent=5 // pred_fallthru
      _
    %p1078 = scmp.le.s32.totalorder 2, %s10
    // Predicated region
    $region61: #{main_model_forward.1} parent=5 // pred_check
      %p1079 = pneg %p1078
    $region62: #{main_model_forward.1} parent=5 // pred_check_branch
      %1081 = sbr.rel (%p1079) target = $region64
    $region63: #{main_model_forward.1} parent=5 // pred_region
      %s1082 = ssub.s32 %s10, 2
      // Predicated region
      $region65: #{main_model_forward.1} parent=63 // pred_check
        %p1083 = pneg %p142
      $region66: #{main_model_forward.1} parent=63 // pred_check_branch
        %1085 = sbr.rel (%p1083) target = $region68
      $region67: #{main_model_forward.1} parent=63 // pred_region
        %s1086 = smul.u32 %s21, %s22
        %p1087 = scmp.lt.s32.totalorder %s1086, 0
        %s1088 = scalar_select %p1087, %s1086, 0
        %s1089 = smul.addr %s1088, 8
        %s1090 = scalar_lea.vmem %s4, %s1089
      $region68: #{main_model_forward.1} parent=63 // pred_fallthru
        _
    $region64: #{main_model_forward.1} parent=5 // pred_fallthru
      _
  $region6: #{main_model_forward.1} parent=0 // loop_footer
    %s14 = sadd.s32 1, %s10
  $region7: #{main_model_forward.1} parent=0 // loop_footer_branch
    %9 = sbr.rel target = $region3
  $region8: #{main_model_forward.1} parent=0 // loop_exit
    _

</llo_original>
